<compile_context>
chip_gen: v7x
topology: tpu7x:2x2x1
jax: 0.10.0
libtpu: 0.0.40
codegen_flags: <defaults>
</compile_context>

<pallas_src>
import functools

import jax
import jax.numpy as jnp
from jax.experimental import pallas as pl
from jax.experimental.pallas import tpu as pltpu

LANES = 128


# ---------------------------------------------------------------------------
# One-time parameter packing (hoisted out of the per-call path).
# ---------------------------------------------------------------------------
def pack_params(params, input_features, hidden_units, output_features):
    """Pack PyTorch-layout params into one lane-dense f32 slab.

    Row layout (all rows zero-padded to 128 lanes):
      rows [0, F)               : W1^T   (row k = weights fed by input feature k)
      row  F                    : b1
      row  F+1                  : b2
      rows [F+2, F+2+H)         : W3^T   (row k = last-layer weights from hidden k)
      row  F+2+H                : b3
      rows [w2_row, w2_row+128) : W2^T zero-padded to a 128x128 MXU block;
                                  w2_row rounded up to a multiple of 8 so the
                                  in-kernel slice is sublane-tile aligned.
    """
    F, H, O = input_features, hidden_units, output_features
    assert H <= LANES and O <= LANES

    header = F + H + 3
    w2_row = ((header + 7) // 8) * 8
    total_rows = w2_row + LANES

    slab = jnp.zeros((total_rows, LANES), jnp.float32)
    slab = slab.at[0:F, 0:H].set(params["w1"].T.astype(jnp.float32))
    slab = slab.at[F, 0:H].set(params["b1"].astype(jnp.float32))
    slab = slab.at[F + 1, 0:H].set(params["b2"].astype(jnp.float32))
    slab = slab.at[F + 2:F + 2 + H, 0:O].set(params["w3"].T.astype(jnp.float32))
    slab = slab.at[F + 2 + H, 0:O].set(params["b3"].astype(jnp.float32))
    slab = slab.at[w2_row:w2_row + H, 0:H].set(params["w2"].T.astype(jnp.float32))
    return slab, w2_row


# ---------------------------------------------------------------------------
# Kernel: whole MLP on a (batch_tile, 128) lane-dense activation slab.
# ---------------------------------------------------------------------------
def moon_mlp_kernel(x_ref, p_ref, o_ref, *, in_features, hidden, w2_row):
    F, H = in_features, hidden
    r_b1 = F
    r_b2 = F + 1
    r_w3 = F + 2
    r_b3 = F + 2 + H

    bt = x_ref.shape[0]
    x = x_ref[...].astype(jnp.float32)                      # [bt, F]

    # ---- Linear 1 (K = in_features, tiny) + ReLU: VPU broadcast mult-adds.
    h1 = jnp.broadcast_to(p_ref[r_b1:r_b1 + 1, :], (bt, LANES))
    for k in range(F):                                      # static unroll
        h1 = h1 + x[:, k:k + 1] * p_ref[k:k + 1, :]
    h1 = jnp.maximum(h1, 0.0)                               # lanes >= H stay 0

    # ---- Linear 2 (H x H) + ReLU: one MXU matmul against a zero-padded
    #      128x128 weight block (h1 lanes >= H are zero, so padding is inert).
    w2 = p_ref[w2_row:w2_row + LANES, :]                    # [128, 128], aligned
    h2 = jnp.dot(h1, w2, preferred_element_type=jnp.float32)
    h2 = jnp.maximum(h2 + p_ref[r_b2:r_b2 + 1, :], 0.0)

    # ---- Linear 3 (N = out_features, tiny): VPU broadcast mult-adds over H.
    out = jnp.broadcast_to(p_ref[r_b3:r_b3 + 1, :], (bt, LANES))
    for k in range(H):                                      # static unroll
        out = out + h2[:, k:k + 1] * p_ref[r_w3 + k:r_w3 + k + 1, :]

    # Lane-dense store; lanes >= out_features are exactly zero.
    o_ref[...] = out.astype(o_ref.dtype)


def _pick_batch_tile(batch):
    # One block unless the batch is large; large batches get a "parallel" grid
    # so the pipeline (and v7x's two TensorCores) can split the work.
    if batch > 512 and batch % 512 == 0:
        return 512
    return batch


@functools.partial(
    jax.jit,
    static_argnames=("input_features", "hidden_units", "output_features", "w2_row"),
)
def moon_model_forward(x, param_slab, *, input_features, hidden_units,
                       output_features, w2_row):
    B, F = x.shape
    assert F == input_features
    bt = _pick_batch_tile(B)
    assert B % bt == 0 and (bt == B or bt % 8 == 0)

    kernel = functools.partial(moon_mlp_kernel, in_features=F,
                               hidden=hidden_units, w2_row=w2_row)

    out_padded = pl.pallas_call(
        kernel,
        out_shape=jax.ShapeDtypeStruct((B, LANES), x.dtype),
        grid_spec=pltpu.PrefetchScalarGridSpec(
            num_scalar_prefetch=0,
            grid=(B // bt,),
            in_specs=[
                pl.BlockSpec((bt, F), lambda i: (i, 0)),
                pl.BlockSpec(param_slab.shape, lambda i: (0, 0)),  # resident weights
            ],
            out_specs=pl.BlockSpec((bt, LANES), lambda i: (i, 0)),
        ),
        compiler_params=pltpu.CompilerParams(
            dimension_semantics=("parallel",)),
    )(x, param_slab)

    # Only the first `output_features` lanes are meaningful.
    return out_padded[:, :output_features]


# ---------------------------------------------------------------------------
# Init / reference (PyTorch nn.Linear semantics and layout).
# ---------------------------------------------------------------------------
def init_params(key, input_features, output_features, hidden_units=14):
    """Deterministic init mimicking nn.Linear's U(-1/sqrt(fan_in), 1/sqrt(fan_in))."""
    ks = jax.random.split(key, 6)

    def lin_init(kw, kb, fan_in, fan_out):
        bound = 1.0 / jnp.sqrt(jnp.float32(fan_in))
        w = jax.random.uniform(kw, (fan_out, fan_in), jnp.float32, -bound, bound)
        b = jax.random.uniform(kb, (fan_out,), jnp.float32, -bound, bound)
        return w, b

    w1, b1 = lin_init(ks[0], ks[1], input_features, hidden_units)
    w2, b2 = lin_init(ks[2], ks[3], hidden_units, hidden_units)
    w3, b3 = lin_init(ks[4], ks[5], hidden_units, output_features)
    return {"w1": w1, "b1": b1, "w2": w2, "b2": b2, "w3": w3, "b3": b3}


def reference_forward(x, params):
    """Pure-JAX reference with exact PyTorch nn.Linear semantics."""
    hp = jax.lax.Precision.HIGHEST
    h1 = jnp.maximum(jnp.dot(x, params["w1"].T, precision=hp) + params["b1"], 0.0)
    h2 = jnp.maximum(jnp.dot(h1, params["w2"].T, precision=hp) + params["b2"], 0.0)
    return jnp.dot(h2, params["w3"].T, precision=hp) + params["b3"]


if __name__ == "__main__":
    key = jax.random.PRNGKey(0)
    k_x, k_p = jax.random.split(key)

    # make_moons-style problem: 2 input features, 1 output logit, hidden=14.
    batch = 8
    input_features = 2
    output_features = 1
    hidden_units = 14

    x = jax.random.normal(k_x, (batch, input_features), dtype=jnp.float32)
    params = init_params(k_p, input_features, output_features, hidden_units)

    # One-time packing: transposes / padding hoisted out of the per-call path.
    param_slab, w2_row = pack_params(params, input_features, hidden_units,
                                     output_features)
    param_slab = jax.block_until_ready(param_slab)

    out = moon_model_forward(x, param_slab,
                             input_features=input_features,
                             hidden_units=hidden_units,
                             output_features=output_features,
                             w2_row=w2_row)
    out = jax.block_until_ready(out)

    ref = reference_forward(x, params)
    assert out.shape == (batch, output_features)
    assert jnp.allclose(out, ref, atol=1e-4, rtol=1e-4), (
        f"max abs err = {jnp.max(jnp.abs(out - ref))}")

    print("KERNEL_OK")
</pallas_src>

<mosaic_0001>
module attributes {stable_mosaic.version = 11 : i64} {
  func.func @moon_mlp_kernel(%arg0: i32, %arg1: memref<8x2xf32, #tpu.memory_space<vmem>>, %arg2: memref<152x128xf32, #tpu.memory_space<vmem>>, %arg3: memref<8x128xf32, #tpu.memory_space<vmem>>) attributes {dimension_semantics = [#tpu.dimension_semantics<parallel>], iteration_bounds = array<i64: 1>, scalar_prefetch = 0 : i64, scratch_operands = 0 : i64, tpu.core_type = #tpu.core_type<tc>, window_params = [{transform_indices = @transform_0, window_bounds = array<i64: 8, 2>}, {pipeline_mode = #tpu.pipeline_mode<synchronous>, transform_indices = @transform_1, window_bounds = array<i64: 152, 128>}, {transform_indices = @transform_2, window_bounds = array<i64: 8, 128>}]} {
    %c0 = arith.constant 0 : index
    %c0_0 = arith.constant 0 : index
    %0 = vector.load %arg1[%c0, %c0_0] : memref<8x2xf32, #tpu.memory_space<vmem>>, vector<8x2xf32>
    %c2 = arith.constant 2 : index
    %c0_1 = arith.constant 0 : index
    %1 = vector.load %arg2[%c2, %c0_1] : memref<152x128xf32, #tpu.memory_space<vmem>>, vector<1x128xf32>
    %2 = vector.shape_cast %1 : vector<1x128xf32> to vector<1x128xf32>
    %3 = vector.broadcast %2 : vector<1x128xf32> to vector<8x128xf32>
    %4 = vector.extract_strided_slice %0 {offsets = [0, 0], sizes = [8, 1], strides = [1, 1]} : vector<8x2xf32> to vector<8x1xf32>
    %c0_2 = arith.constant 0 : index
    %c0_3 = arith.constant 0 : index
    %5 = vector.load %arg2[%c0_2, %c0_3] : memref<152x128xf32, #tpu.memory_space<vmem>>, vector<1x128xf32>
    %6 = vector.broadcast %4 : vector<8x1xf32> to vector<8x128xf32>
    %7 = vector.broadcast %5 : vector<1x128xf32> to vector<8x128xf32>
    %8 = arith.mulf %6, %7 : vector<8x128xf32>
    %9 = arith.addf %3, %8 : vector<8x128xf32>
    %10 = vector.extract_strided_slice %0 {offsets = [0, 1], sizes = [8, 1], strides = [1, 1]} : vector<8x2xf32> to vector<8x1xf32>
    %c1 = arith.constant 1 : index
    %c0_4 = arith.constant 0 : index
    %11 = vector.load %arg2[%c1, %c0_4] : memref<152x128xf32, #tpu.memory_space<vmem>>, vector<1x128xf32>
    %12 = vector.broadcast %10 : vector<8x1xf32> to vector<8x128xf32>
    %13 = vector.broadcast %11 : vector<1x128xf32> to vector<8x128xf32>
    %14 = arith.mulf %12, %13 : vector<8x128xf32>
    %15 = arith.addf %9, %14 : vector<8x128xf32>
    %cst = arith.constant 0.000000e+00 : f32
    %16 = vector.broadcast %cst : f32 to vector<8x128xf32>
    %17 = arith.maximumf %15, %16 : vector<8x128xf32>
    %c24 = arith.constant 24 : index
    %c0_5 = arith.constant 0 : index
    %18 = vector.load %arg2[%c24, %c0_5] : memref<152x128xf32, #tpu.memory_space<vmem>>, vector<128x128xf32>
    %cst_6 = arith.constant dense<0.000000e+00> : vector<8x128xf32>
    %19 = tpu.matmul %17, %18, %cst_6 {dimension_numbers = #tpu.dot_dimension_numbers<[1], [0], [0], [1], [0, 0, 1, 1], [], []>} : vector<8x128xf32>, vector<128x128xf32>, vector<8x128xf32> -> vector<8x128xf32>
    %c3 = arith.constant 3 : index
    %c0_7 = arith.constant 0 : index
    %20 = vector.load %arg2[%c3, %c0_7] : memref<152x128xf32, #tpu.memory_space<vmem>>, vector<1x128xf32>
    %21 = vector.broadcast %20 : vector<1x128xf32> to vector<8x128xf32>
    %22 = arith.addf %19, %21 : vector<8x128xf32>
    %cst_8 = arith.constant 0.000000e+00 : f32
    %23 = vector.broadcast %cst_8 : f32 to vector<8x128xf32>
    %24 = arith.maximumf %22, %23 : vector<8x128xf32>
    %c18 = arith.constant 18 : index
    %c0_9 = arith.constant 0 : index
    %25 = vector.load %arg2[%c18, %c0_9] : memref<152x128xf32, #tpu.memory_space<vmem>>, vector<1x128xf32>
    %26 = vector.shape_cast %25 : vector<1x128xf32> to vector<1x128xf32>
    %27 = vector.broadcast %26 : vector<1x128xf32> to vector<8x128xf32>
    %28 = vector.extract_strided_slice %24 {offsets = [0, 0], sizes = [8, 1], strides = [1, 1]} : vector<8x128xf32> to vector<8x1xf32>
    %c4 = arith.constant 4 : index
    %c0_10 = arith.constant 0 : index
    %29 = vector.load %arg2[%c4, %c0_10] : memref<152x128xf32, #tpu.memory_space<vmem>>, vector<1x128xf32>
    %30 = vector.broadcast %28 : vector<8x1xf32> to vector<8x128xf32>
    %31 = vector.broadcast %29 : vector<1x128xf32> to vector<8x128xf32>
    %32 = arith.mulf %30, %31 : vector<8x128xf32>
    %33 = arith.addf %27, %32 : vector<8x128xf32>
    %34 = vector.extract_strided_slice %24 {offsets = [0, 1], sizes = [8, 1], strides = [1, 1]} : vector<8x128xf32> to vector<8x1xf32>
    %c5 = arith.constant 5 : index
    %c0_11 = arith.constant 0 : index
    %35 = vector.load %arg2[%c5, %c0_11] : memref<152x128xf32, #tpu.memory_space<vmem>>, vector<1x128xf32>
    %36 = vector.broadcast %34 : vector<8x1xf32> to vector<8x128xf32>
    %37 = vector.broadcast %35 : vector<1x128xf32> to vector<8x128xf32>
    %38 = arith.mulf %36, %37 : vector<8x128xf32>
    %39 = arith.addf %33, %38 : vector<8x128xf32>
    %40 = vector.extract_strided_slice %24 {offsets = [0, 2], sizes = [8, 1], strides = [1, 1]} : vector<8x128xf32> to vector<8x1xf32>
    %c6 = arith.constant 6 : index
    %c0_12 = arith.constant 0 : index
    %41 = vector.load %arg2[%c6, %c0_12] : memref<152x128xf32, #tpu.memory_space<vmem>>, vector<1x128xf32>
    %42 = vector.broadcast %40 : vector<8x1xf32> to vector<8x128xf32>
    %43 = vector.broadcast %41 : vector<1x128xf32> to vector<8x128xf32>
    %44 = arith.mulf %42, %43 : vector<8x128xf32>
    %45 = arith.addf %39, %44 : vector<8x128xf32>
    %46 = vector.extract_strided_slice %24 {offsets = [0, 3], sizes = [8, 1], strides = [1, 1]} : vector<8x128xf32> to vector<8x1xf32>
    %c7 = arith.constant 7 : index
    %c0_13 = arith.constant 0 : index
    %47 = vector.load %arg2[%c7, %c0_13] : memref<152x128xf32, #tpu.memory_space<vmem>>, vector<1x128xf32>
    %48 = vector.broadcast %46 : vector<8x1xf32> to vector<8x128xf32>
    %49 = vector.broadcast %47 : vector<1x128xf32> to vector<8x128xf32>
    %50 = arith.mulf %48, %49 : vector<8x128xf32>
    %51 = arith.addf %45, %50 : vector<8x128xf32>
    %52 = vector.extract_strided_slice %24 {offsets = [0, 4], sizes = [8, 1], strides = [1, 1]} : vector<8x128xf32> to vector<8x1xf32>
    %c8 = arith.constant 8 : index
    %c0_14 = arith.constant 0 : index
    %53 = vector.load %arg2[%c8, %c0_14] : memref<152x128xf32, #tpu.memory_space<vmem>>, vector<1x128xf32>
    %54 = vector.broadcast %52 : vector<8x1xf32> to vector<8x128xf32>
    %55 = vector.broadcast %53 : vector<1x128xf32> to vector<8x128xf32>
    %56 = arith.mulf %54, %55 : vector<8x128xf32>
    %57 = arith.addf %51, %56 : vector<8x128xf32>
    %58 = vector.extract_strided_slice %24 {offsets = [0, 5], sizes = [8, 1], strides = [1, 1]} : vector<8x128xf32> to vector<8x1xf32>
    %c9 = arith.constant 9 : index
    %c0_15 = arith.constant 0 : index
    %59 = vector.load %arg2[%c9, %c0_15] : memref<152x128xf32, #tpu.memory_space<vmem>>, vector<1x128xf32>
    %60 = vector.broadcast %58 : vector<8x1xf32> to vector<8x128xf32>
    %61 = vector.broadcast %59 : vector<1x128xf32> to vector<8x128xf32>
    %62 = arith.mulf %60, %61 : vector<8x128xf32>
    %63 = arith.addf %57, %62 : vector<8x128xf32>
    %64 = vector.extract_strided_slice %24 {offsets = [0, 6], sizes = [8, 1], strides = [1, 1]} : vector<8x128xf32> to vector<8x1xf32>
    %c10 = arith.constant 10 : index
    %c0_16 = arith.constant 0 : index
    %65 = vector.load %arg2[%c10, %c0_16] : memref<152x128xf32, #tpu.memory_space<vmem>>, vector<1x128xf32>
    %66 = vector.broadcast %64 : vector<8x1xf32> to vector<8x128xf32>
    %67 = vector.broadcast %65 : vector<1x128xf32> to vector<8x128xf32>
    %68 = arith.mulf %66, %67 : vector<8x128xf32>
    %69 = arith.addf %63, %68 : vector<8x128xf32>
    %70 = vector.extract_strided_slice %24 {offsets = [0, 7], sizes = [8, 1], strides = [1, 1]} : vector<8x128xf32> to vector<8x1xf32>
    %c11 = arith.constant 11 : index
    %c0_17 = arith.constant 0 : index
    %71 = vector.load %arg2[%c11, %c0_17] : memref<152x128xf32, #tpu.memory_space<vmem>>, vector<1x128xf32>
    %72 = vector.broadcast %70 : vector<8x1xf32> to vector<8x128xf32>
    %73 = vector.broadcast %71 : vector<1x128xf32> to vector<8x128xf32>
    %74 = arith.mulf %72, %73 : vector<8x128xf32>
    %75 = arith.addf %69, %74 : vector<8x128xf32>
    %76 = vector.extract_strided_slice %24 {offsets = [0, 8], sizes = [8, 1], strides = [1, 1]} : vector<8x128xf32> to vector<8x1xf32>
    %c12 = arith.constant 12 : index
    %c0_18 = arith.constant 0 : index
    %77 = vector.load %arg2[%c12, %c0_18] : memref<152x128xf32, #tpu.memory_space<vmem>>, vector<1x128xf32>
    %78 = vector.broadcast %76 : vector<8x1xf32> to vector<8x128xf32>
    %79 = vector.broadcast %77 : vector<1x128xf32> to vector<8x128xf32>
    %80 = arith.mulf %78, %79 : vector<8x128xf32>
    %81 = arith.addf %75, %80 : vector<8x128xf32>
    %82 = vector.extract_strided_slice %24 {offsets = [0, 9], sizes = [8, 1], strides = [1, 1]} : vector<8x128xf32> to vector<8x1xf32>
    %c13 = arith.constant 13 : index
    %c0_19 = arith.constant 0 : index
    %83 = vector.load %arg2[%c13, %c0_19] : memref<152x128xf32, #tpu.memory_space<vmem>>, vector<1x128xf32>
    %84 = vector.broadcast %82 : vector<8x1xf32> to vector<8x128xf32>
    %85 = vector.broadcast %83 : vector<1x128xf32> to vector<8x128xf32>
    %86 = arith.mulf %84, %85 : vector<8x128xf32>
    %87 = arith.addf %81, %86 : vector<8x128xf32>
    %88 = vector.extract_strided_slice %24 {offsets = [0, 10], sizes = [8, 1], strides = [1, 1]} : vector<8x128xf32> to vector<8x1xf32>
    %c14 = arith.constant 14 : index
    %c0_20 = arith.constant 0 : index
    %89 = vector.load %arg2[%c14, %c0_20] : memref<152x128xf32, #tpu.memory_space<vmem>>, vector<1x128xf32>
    %90 = vector.broadcast %88 : vector<8x1xf32> to vector<8x128xf32>
    %91 = vector.broadcast %89 : vector<1x128xf32> to vector<8x128xf32>
    %92 = arith.mulf %90, %91 : vector<8x128xf32>
    %93 = arith.addf %87, %92 : vector<8x128xf32>
    %94 = vector.extract_strided_slice %24 {offsets = [0, 11], sizes = [8, 1], strides = [1, 1]} : vector<8x128xf32> to vector<8x1xf32>
    %c15 = arith.constant 15 : index
    %c0_21 = arith.constant 0 : index
    %95 = vector.load %arg2[%c15, %c0_21] : memref<152x128xf32, #tpu.memory_space<vmem>>, vector<1x128xf32>
    %96 = vector.broadcast %94 : vector<8x1xf32> to vector<8x128xf32>
    %97 = vector.broadcast %95 : vector<1x128xf32> to vector<8x128xf32>
    %98 = arith.mulf %96, %97 : vector<8x128xf32>
    %99 = arith.addf %93, %98 : vector<8x128xf32>
    %100 = vector.extract_strided_slice %24 {offsets = [0, 12], sizes = [8, 1], strides = [1, 1]} : vector<8x128xf32> to vector<8x1xf32>
    %c16 = arith.constant 16 : index
    %c0_22 = arith.constant 0 : index
    %101 = vector.load %arg2[%c16, %c0_22] : memref<152x128xf32, #tpu.memory_space<vmem>>, vector<1x128xf32>
    %102 = vector.broadcast %100 : vector<8x1xf32> to vector<8x128xf32>
    %103 = vector.broadcast %101 : vector<1x128xf32> to vector<8x128xf32>
    %104 = arith.mulf %102, %103 : vector<8x128xf32>
    %105 = arith.addf %99, %104 : vector<8x128xf32>
    %106 = vector.extract_strided_slice %24 {offsets = [0, 13], sizes = [8, 1], strides = [1, 1]} : vector<8x128xf32> to vector<8x1xf32>
    %c17 = arith.constant 17 : index
    %c0_23 = arith.constant 0 : index
    %107 = vector.load %arg2[%c17, %c0_23] : memref<152x128xf32, #tpu.memory_space<vmem>>, vector<1x128xf32>
    %108 = vector.broadcast %106 : vector<8x1xf32> to vector<8x128xf32>
    %109 = vector.broadcast %107 : vector<1x128xf32> to vector<8x128xf32>
    %110 = arith.mulf %108, %109 : vector<8x128xf32>
    %111 = arith.addf %105, %110 : vector<8x128xf32>
    %c0_24 = arith.constant 0 : index
    %c0_25 = arith.constant 0 : index
    %112 = vector.load %arg3[%c0_24, %c0_25] : memref<8x128xf32, #tpu.memory_space<vmem>>, vector<8x128xf32>
    tpu.vector_store %arg3[%c0_24, %c0_25], %111 {strides = array<i32>} : memref<8x128xf32, #tpu.memory_space<vmem>>, vector<8x128xf32>,
    return
  }
  func.func @transform_0(%arg0: i32) -> (i32, i32) {
    %c0_i32 = arith.constant 0 : i32
    %c0_i32_0 = arith.constant 0 : i32
    return %arg0, %c0_i32 : i32, i32
  }
  func.func @transform_1(%arg0: i32) -> (i32, i32) {
    %c0_i32 = arith.constant 0 : i32
    %c0_i32_0 = arith.constant 0 : i32
    %c0_i32_1 = arith.constant 0 : i32
    return %c0_i32, %c0_i32_0 : i32, i32
  }
  func.func @transform_2(%arg0: i32) -> (i32, i32) {
    %c0_i32 = arith.constant 0 : i32
    %c0_i32_0 = arith.constant 0 : i32
    return %arg0, %c0_i32 : i32, i32
  }
}

</mosaic_0001>

<llo_original>
// kernel: moon_model_forward.1
$region0: #{moon_model_forward.1}
  #allocation0 [shape = 'u32[]', space=smem, size = 0x4, offset = 0x4, fixed_abs, tag = 'smem constant byte address 0x4 - core index']
  #allocation1 [shape = 'u32[144,128]{1,0:T(1,128)}', space=vmem, size = 0x12000, scoped, tag = 'internal scratch']
  %s0 = inlined_call_operand.vmem [shape: f32[8,2], index: 0, kind: input, shape index: {}]
  %s1 = inlined_call_operand.hbm [shape: f32[152,128], index: 1, kind: input, shape index: {}]
  %s2 = inlined_call_operand.vmem [shape: f32[8,128], index: 2, kind: output, shape index: {}]
  %s3 = sld [smem:[#allocation0]]
  $region22: #{moon_model_forward.1} parent=0
    _
  %s5 = ssub.s32 1, %s3
  %s6 = scalar_select 0, %s5, %s3
  $region1: #{moon_model_forward.1} parent=0
    #allocation2 [shape = 'u8[77824]{0}', space=vmem, size = 0x13000, scoped, tag = 'input window, operand 1, single buffered']
    #allocation3 [shape = 's32[1]{0}', space=sflag, size = 0x4, scoped, tag = 'scoped memory for moon_model_forward.1']
    %7 = vsyncpa [#allocation3], 0
    // Predicated region
    $region2: #{moon_model_forward.1} parent=1 // pred_check
      _
    $region3: #{moon_model_forward.1} parent=1 // pred_check_branch
      %9 = sbr.rel (0) target = $region5
    $region4: #{moon_model_forward.1} parent=1 // pred_region
      _
    $region5: #{moon_model_forward.1} parent=1 // pred_fallthru
      _
    // Predicated region
    $region6: #{moon_model_forward.1} parent=1 // pred_check
      _
    $region7: #{moon_model_forward.1} parent=1 // pred_check_branch
      %11 = sbr.rel (0) target = $region9
    $region8: #{moon_model_forward.1} parent=1 // pred_region
      %s13 = ssub.s32 2432, 2432
      %14 = vsyncadd [#allocation3], %s13
      %s15 = sshll.u32 [#allocation2], 4
      %s16 = int_to_ptr.vmem [resolvable:$true] %s15
      %21 = dma.hbm_to_vmem [thread:$0]  %s1, 2432, %s16, [#allocation3], 128, 128, 8
    $region9: #{moon_model_forward.1} parent=1 // pred_fallthru
      _
    // Predicated region
    $region10: #{moon_model_forward.1} parent=1 // pred_check
      _
    $region11: #{moon_model_forward.1} parent=1 // pred_check_branch
      %23 = sbr.rel (0) target = $region13
    $region12: #{moon_model_forward.1} parent=1 // pred_region
      %24 = dma.done [#allocation3], 2432
    $region13: #{moon_model_forward.1} parent=1 // pred_fallthru
      _
    %v25 = vld [vmem:[%s0] sm:$0xff]
    %v26 = vld [vmem:[#allocation2 + $0x2] sm:$0x1]
    %v27 = vlaneseq
    %v28 = vshrl.u32 %v27, 7
    %v29 = vsub.s32 0, %v28
    %v30 = vrot.slane %v26, %v29
    %v31 = vld [vmem:[#allocation2] sm:$0x1]
    %33 = vset.pattern.permute.xlu0 0
    %34 = vperm.xlu0 %33, %v25
    %v35 = vpop.permute.xlu0 %34
    %v37 = vlaneseq
    %v38 = vshrl.u32 %v37, 7
    %v39 = vsub.s32 0, %v38
    %v40 = vrot.slane %v31, %v39
    %v41 = vmul.f32 %v35, %v40
    %v42 = vadd.f32 %v30, %v41
    %v43 = vld [vmem:[#allocation2 + $0x1] sm:$0x1]
    %44 = vset.pattern.permute.xlu0 1
    %45 = vperm.xlu0 %44, %v25
    %v46 = vpop.permute.xlu0 %45
    %v48 = vlaneseq
    %v49 = vshrl.u32 %v48, 7
    %v50 = vsub.s32 0, %v49
    %v51 = vrot.slane %v43, %v50
    %v52 = vmul.f32 %v46, %v51
    %v53 = vadd.f32 %v42, %v52
    %v54 = vmax.f32 %v53, 0.0
    %v55 = vld [vmem:[#allocation2 + $0x18] sm:$0xff]
    %v56 = vld [vmem:[#allocation2 + $0x20] sm:$0xff]
    %v57 = vld [vmem:[#allocation2 + $0x28] sm:$0xff]
    %v58 = vld [vmem:[#allocation2 + $0x30] sm:$0xff]
    %v59 = vld [vmem:[#allocation2 + $0x38] sm:$0xff]
    %v60 = vld [vmem:[#allocation2 + $0x40] sm:$0xff]
    %v61 = vld [vmem:[#allocation2 + $0x48] sm:$0xff]
    %v62 = vld [vmem:[#allocation2 + $0x50] sm:$0xff]
    %v63 = vld [vmem:[#allocation2 + $0x58] sm:$0xff]
    %v64 = vld [vmem:[#allocation2 + $0x60] sm:$0xff]
    %v65 = vld [vmem:[#allocation2 + $0x68] sm:$0xff]
    %v66 = vld [vmem:[#allocation2 + $0x70] sm:$0xff]
    %v67 = vld [vmem:[#allocation2 + $0x78] sm:$0xff]
    %v68 = vld [vmem:[#allocation2 + $0x80] sm:$0xff]
    %v69 = vld [vmem:[#allocation2 + $0x88] sm:$0xff]
    %v70 = vld [vmem:[#allocation2 + $0x90] sm:$0xff]
    %v71 = vld [vmem:[#allocation2 + $0x3] sm:$0x1]
    %v72 = vlaneseq
    %v73 = vshrl.u32 %v72, 7
    %v74 = vsub.s32 0, %v73
    %v75 = vrot.slane %v71, %v74
    %76 = vmatprep.subr.mxu0 0.0
    %77 = vmatpush1.msra.mxu0 %v55
    %78 = vmatprep.subr.mxu0 0.0
    %79 = vmatpush1.msra.mxu0 %v56
    %80 = vmatprep.subr.mxu0 0.0
    %81 = vmatpush1.msra.mxu0 %v57
    %82 = vmatprep.subr.mxu0 0.0
    %83 = vmatpush1.msra.mxu0 %v58
    %84 = vmatprep.subr.mxu0 0.0
    %85 = vmatpush1.msra.mxu0 %v59
    %86 = vmatprep.subr.mxu0 0.0
    %87 = vmatpush1.msra.mxu0 %v60
    %88 = vmatprep.subr.mxu0 0.0
    %89 = vmatpush1.msra.mxu0 %v61
    %90 = vmatprep.subr.mxu0 0.0
    %91 = vmatpush1.msra.mxu0 %v62
    %92 = vmatprep.subr.mxu0 0.0
    %93 = vmatpush1.msra.mxu0 %v63
    %94 = vmatprep.subr.mxu0 0.0
    %95 = vmatpush1.msra.mxu0 %v64
    %96 = vmatprep.subr.mxu0 0.0
    %97 = vmatpush1.msra.mxu0 %v65
    %98 = vmatprep.subr.mxu0 0.0
    %99 = vmatpush1.msra.mxu0 %v66
    %100 = vmatprep.subr.mxu0 0.0
    %101 = vmatpush1.msra.mxu0 %v67
    %102 = vmatprep.subr.mxu0 0.0
    %103 = vmatpush1.msra.mxu0 %v68
    %104 = vmatprep.subr.mxu0 0.0
    %105 = vmatpush1.msra.mxu0 %v69
    %106 = vmatprep.subr.mxu0 0.0
    %107 = vmatpush1.msra.mxu0 %v70
    %108 = vmatprep.subr.mxu0 0.0
    %109 = vmatpush1.msra.mxu0 0.0
    %110 = vmatprep.subr.mxu0 0.0
    %111 = vmatpush1.msra.mxu0 0.0
    %112 = vmatprep.subr.mxu0 0.0
    %113 = vmatpush1.msra.mxu0 0.0
    %114 = vmatprep.subr.mxu0 0.0
    %115 = vmatpush1.msra.mxu0 0.0
    %116 = vmatprep.subr.mxu0 0.0
    %117 = vmatpush1.msra.mxu0 0.0
    %118 = vmatprep.subr.mxu0 0.0
    %119 = vmatpush1.msra.mxu0 0.0
    %120 = vmatprep.subr.mxu0 0.0
    %121 = vmatpush1.msra.mxu0 0.0
    %122 = vmatprep.subr.mxu0 0.0
    %123 = vmatpush1.msra.mxu0 0.0
    %124 = vmatprep.subr.mxu0 0.0
    %125 = vmatpush1.msra.mxu0 0.0
    %126 = vmatprep.subr.mxu0 0.0
    %127 = vmatpush1.msra.mxu0 0.0
    %128 = vmatprep.subr.mxu0 0.0
    %129 = vmatpush1.msra.mxu0 0.0
    %130 = vmatprep.subr.mxu0 0.0
    %131 = vmatpush1.msra.mxu0 0.0
    %132 = vmatprep.subr.mxu0 0.0
    %133 = vmatpush1.msra.mxu0 0.0
    %134 = vmatprep.subr.mxu0 0.0
    %135 = vmatpush1.msra.mxu0 0.0
    %136 = vmatprep.subr.mxu0 0.0
    %137 = vmatpush1.msra.mxu0 0.0
    %138 = vmatprep.subr.mxu0 0.0
    %139 = vmatpush1.msra.mxu0 0.0
    %140 = vmatprep.mubr.f32.mxu0 0.0
    %141 = vmatmul.mubr.f32.gmra.mrb[0].mxu0 %v54
    %v142 = vpop.f32.mrb[0].mxu0
    %v143 = vadd.f32 %v75, %v142
    %v144 = vpop.f32.mrb[0].mxu0
    %145 = vdwg.mxu0
    %v146 = vmax.f32 %v143, 0.0
    %v147 = vld [vmem:[#allocation2 + $0x12] sm:$0x1]
    %v148 = vlaneseq
    %v149 = vshrl.u32 %v148, 7
    %v150 = vsub.s32 0, %v149
    %v151 = vrot.slane %v147, %v150
    %v152 = vld [vmem:[#allocation2 + $0x4] sm:$0x1]
    %154 = vset.pattern.permute.xlu0 0
    %155 = vperm.xlu0 %154, %v146
    %v156 = vpop.permute.xlu0 %155
    %v158 = vlaneseq
    %v159 = vshrl.u32 %v158, 7
    %v160 = vsub.s32 0, %v159
    %v161 = vrot.slane %v152, %v160
    %v162 = vmul.f32 %v156, %v161
    %v163 = vadd.f32 %v151, %v162
    %v164 = vld [vmem:[#allocation2 + $0x5] sm:$0x1]
    %165 = vset.pattern.permute.xlu0 1
    %166 = vperm.xlu0 %165, %v146
    %v167 = vpop.permute.xlu0 %166
    %v169 = vlaneseq
    %v170 = vshrl.u32 %v169, 7
    %v171 = vsub.s32 0, %v170
    %v172 = vrot.slane %v164, %v171
    %v173 = vmul.f32 %v167, %v172
    %v174 = vadd.f32 %v163, %v173
    %v175 = vld [vmem:[#allocation2 + $0x6] sm:$0x1]
    %176 = vset.pattern.permute.xlu0 2
    %177 = vperm.xlu0 %176, %v146
    %v178 = vpop.permute.xlu0 %177
    %v180 = vlaneseq
    %v181 = vshrl.u32 %v180, 7
    %v182 = vsub.s32 0, %v181
    %v183 = vrot.slane %v175, %v182
    %v184 = vmul.f32 %v178, %v183
    %v185 = vadd.f32 %v174, %v184
    %v186 = vld [vmem:[#allocation2 + $0x7] sm:$0x1]
    %187 = vset.pattern.permute.xlu0 3
    %188 = vperm.xlu0 %187, %v146
    %v189 = vpop.permute.xlu0 %188
    %v191 = vlaneseq
    %v192 = vshrl.u32 %v191, 7
    %v193 = vsub.s32 0, %v192
    %v194 = vrot.slane %v186, %v193
    %v195 = vmul.f32 %v189, %v194
    %v196 = vadd.f32 %v185, %v195
    %v197 = vld [vmem:[#allocation2 + $0x8] sm:$0x1]
    %198 = vset.pattern.permute.xlu0 4
    %199 = vperm.xlu0 %198, %v146
    %v200 = vpop.permute.xlu0 %199
    %v202 = vlaneseq
    %v203 = vshrl.u32 %v202, 7
    %v204 = vsub.s32 0, %v203
    %v205 = vrot.slane %v197, %v204
    %v206 = vmul.f32 %v200, %v205
    %v207 = vadd.f32 %v196, %v206
    %v208 = vld [vmem:[#allocation2 + $0x9] sm:$0x1]
    %209 = vset.pattern.permute.xlu0 5
    %210 = vperm.xlu0 %209, %v146
    %v211 = vpop.permute.xlu0 %210
    %v213 = vlaneseq
    %v214 = vshrl.u32 %v213, 7
    %v215 = vsub.s32 0, %v214
    %v216 = vrot.slane %v208, %v215
    %v217 = vmul.f32 %v211, %v216
    %v218 = vadd.f32 %v207, %v217
    %v219 = vld [vmem:[#allocation2 + $0xa] sm:$0x1]
    %220 = vset.pattern.permute.xlu0 6
    %221 = vperm.xlu0 %220, %v146
    %v222 = vpop.permute.xlu0 %221
    %v224 = vlaneseq
    %v225 = vshrl.u32 %v224, 7
    %v226 = vsub.s32 0, %v225
    %v227 = vrot.slane %v219, %v226
    %v228 = vmul.f32 %v222, %v227
    %v229 = vadd.f32 %v218, %v228
    %v230 = vld [vmem:[#allocation2 + $0xb] sm:$0x1]
    %231 = vset.pattern.permute.xlu0 7
    %232 = vperm.xlu0 %231, %v146
    %v233 = vpop.permute.xlu0 %232
    %v235 = vlaneseq
    %v236 = vshrl.u32 %v235, 7
    %v237 = vsub.s32 0, %v236
    %v238 = vrot.slane %v230, %v237
    %v239 = vmul.f32 %v233, %v238
    %v240 = vadd.f32 %v229, %v239
    %v241 = vld [vmem:[#allocation2 + $0xc] sm:$0x1]
    %242 = vset.pattern.permute.xlu0 8
    %243 = vperm.xlu0 %242, %v146
    %v244 = vpop.permute.xlu0 %243
    %v246 = vlaneseq
    %v247 = vshrl.u32 %v246, 7
    %v248 = vsub.s32 0, %v247
    %v249 = vrot.slane %v241, %v248
    %v250 = vmul.f32 %v244, %v249
    %v251 = vadd.f32 %v240, %v250
    %v252 = vld [vmem:[#allocation2 + $0xd] sm:$0x1]
    %253 = vset.pattern.permute.xlu0 9
    %254 = vperm.xlu0 %253, %v146
    %v255 = vpop.permute.xlu0 %254
    %v257 = vlaneseq
    %v258 = vshrl.u32 %v257, 7
    %v259 = vsub.s32 0, %v258
    %v260 = vrot.slane %v252, %v259
    %v261 = vmul.f32 %v255, %v260
    %v262 = vadd.f32 %v251, %v261
    %v263 = vld [vmem:[#allocation2 + $0xe] sm:$0x1]
    %264 = vset.pattern.permute.xlu0 10
    %265 = vperm.xlu0 %264, %v146
    %v266 = vpop.permute.xlu0 %265
    %v268 = vlaneseq
    %v269 = vshrl.u32 %v268, 7
    %v270 = vsub.s32 0, %v269
    %v271 = vrot.slane %v263, %v270
    %v272 = vmul.f32 %v266, %v271
    %v273 = vadd.f32 %v262, %v272
    %v274 = vld [vmem:[#allocation2 + $0xf] sm:$0x1]
    %275 = vset.pattern.permute.xlu0 11
    %276 = vperm.xlu0 %275, %v146
    %v277 = vpop.permute.xlu0 %276
    %v279 = vlaneseq
    %v280 = vshrl.u32 %v279, 7
    %v281 = vsub.s32 0, %v280
    %v282 = vrot.slane %v274, %v281
    %v283 = vmul.f32 %v277, %v282
    %v284 = vadd.f32 %v273, %v283
    %v285 = vld [vmem:[#allocation2 + $0x10] sm:$0x1]
    %286 = vset.pattern.permute.xlu0 12
    %287 = vperm.xlu0 %286, %v146
    %v288 = vpop.permute.xlu0 %287
    %v290 = vlaneseq
    %v291 = vshrl.u32 %v290, 7
    %v292 = vsub.s32 0, %v291
    %v293 = vrot.slane %v285, %v292
    %v294 = vmul.f32 %v288, %v293
    %v295 = vadd.f32 %v284, %v294
    %v296 = vld [vmem:[#allocation2 + $0x11] sm:$0x1]
    %297 = vset.pattern.permute.xlu0 13
    %298 = vperm.xlu0 %297, %v146
    %v299 = vpop.permute.xlu0 %298
    %v301 = vlaneseq
    %v302 = vshrl.u32 %v301, 7
    %v303 = vsub.s32 0, %v302
    %v304 = vrot.slane %v296, %v303
    %v305 = vmul.f32 %v299, %v304
    %v306 = vadd.f32 %v295, %v305
    %307 = vst [vmem:[%s2] sm:$0xff] %v306
    // Predicated region
    $region14: #{moon_model_forward.1} parent=1 // pred_check
      _
    $region15: #{moon_model_forward.1} parent=1 // pred_check_branch
      %309 = sbr.rel (0) target = $region17
    $region16: #{moon_model_forward.1} parent=1 // pred_region
      _
    $region17: #{moon_model_forward.1} parent=1 // pred_fallthru
      _
    // Predicated region
    $region18: #{moon_model_forward.1} parent=1 // pred_check
      _
    $region19: #{moon_model_forward.1} parent=1 // pred_check_branch
      %311 = sbr.rel (0) target = $region21
    $region20: #{moon_model_forward.1} parent=1 // pred_region
      _
    $region21: #{moon_model_forward.1} parent=1 // pred_fallthru
      _
    %312 = vsyncpa [#allocation3], 1

</llo_original>
